<compile_context>
chip_gen: v5e
topology: v5e:2x2
jax: 0.10.0
libtpu: 0.0.40
codegen_flags: <defaults>
</compile_context>

<pallas_src>
import functools

import jax
import jax.numpy as jnp
from jax.experimental import pallas as pl
from jax.experimental.pallas import tpu as pltpu


# --------------------------------------------------------------------------- #
# Kernels
# --------------------------------------------------------------------------- #

def _compute_norm(x_ref, gamma_ref, beta_ref, *, eps, rms, use_beta):
    """f32 LayerNorm / RMSNorm of the resident (tm, K) row block."""
    x = x_ref[...].astype(jnp.float32)
    gamma = gamma_ref[...].astype(jnp.float32)
    if rms:
        ms = jnp.mean(x * x, axis=-1, keepdims=True)
        inv = jax.lax.rsqrt(ms + eps)
        xn = x * (inv * gamma)
    else:
        mean = jnp.mean(x, axis=-1, keepdims=True)
        xc = x - mean
        var = jnp.mean(xc * xc, axis=-1, keepdims=True)  # centered: no cancellation
        inv = jax.lax.rsqrt(var + eps)
        xn = xc * (inv * gamma)
        if use_beta:
            xn = xn + beta_ref[...].astype(jnp.float32)
    return xn


def _fused_kernel(x_ref, gamma_ref, beta_ref, wt_ref, b_ref, o_ref,
                  *scratch, eps, rms, use_beta, cache_norm):
    # x_ref: (tm, K)  gamma/beta: (1, K)  wt_ref: (K, tn)  b_ref: (1, tn)
    # o_ref: (tm, tn) scratch[0] (optional): (tm, K) cached normalized rows.
    if cache_norm:
        xn_ref = scratch[0]

        @pl.when(pl.program_id(1) == 0)
        def _():
            xn_ref[...] = _compute_norm(
                x_ref, gamma_ref, beta_ref, eps=eps, rms=rms,
                use_beta=use_beta).astype(xn_ref.dtype)

        xn = xn_ref[...]
    else:
        xn = _compute_norm(x_ref, gamma_ref, beta_ref, eps=eps, rms=rms,
                           use_beta=use_beta).astype(wt_ref.dtype)

    acc = jnp.dot(xn, wt_ref[...], preferred_element_type=jnp.float32)
    acc = acc + b_ref[...].astype(jnp.float32)
    o_ref[...] = acc.astype(o_ref.dtype)


def _norm_kernel(x_ref, gamma_ref, beta_ref, xn_ref, *, eps, rms, use_beta):
    xn_ref[...] = _compute_norm(x_ref, gamma_ref, beta_ref, eps=eps, rms=rms,
                                use_beta=use_beta).astype(xn_ref.dtype)


def _matmul_bias_kernel(xn_ref, wt_ref, b_ref, o_ref, acc_ref):
    @pl.when(pl.program_id(2) == 0)
    def _():
        acc_ref[...] = jnp.zeros_like(acc_ref)

    acc_ref[...] += jnp.dot(xn_ref[...], wt_ref[...],
                            preferred_element_type=jnp.float32)

    @pl.when(pl.program_id(2) == pl.num_programs(2) - 1)
    def _():
        o_ref[...] = (acc_ref[...] + b_ref[...].astype(jnp.float32)
                      ).astype(o_ref.dtype)


# --------------------------------------------------------------------------- #
# Tile / VMEM selection
# --------------------------------------------------------------------------- #

_TM_PREFS = (1024, 768, 512, 384, 256, 128)
_TN_PREFS = (1024, 512, 256, 128)
_TK_PREFS = (2048, 1024, 512, 256, 128)


def _vmem_capacity_bytes():
    try:
        return int(pltpu.get_tpu_info().vmem_capacity_bytes)
    except Exception:
        return 64 * 1024 * 1024  # conservative: v7x per-TensorCore VMEM


def _tile_candidates(dim, prefs, fallback=(64, 32, 16, 8)):
    cands = [c for c in prefs if dim % c == 0]
    if cands:
        return cands
    # last-resort escape hatch (correctness over perf)
    return [dim] + [c for c in fallback if dim % c == 0]


def _fused_vmem_bytes(tm, tn, K, x_b, w_b, o_b, s_b):
    return (2 * tm * K * x_b        # x rows, double-buffered
            + 2 * K * tn * w_b      # W^T column slice, double-buffered
            + 2 * tm * tn * o_b     # output tile, double-buffered
            + tm * K * s_b          # xn scratch
            + 2 * tm * K * 4        # f32 norm temporaries (x_f32, xn_f32)
            + 4 * 2 * K * 4         # gamma / beta
            + 2 * 2 * tn * 4)       # bias slice


def _select_fused_tiles(M, N, K, x_b, w_b, o_b, s_b, budget):
    tm_cands = [M] if M < 128 else _tile_candidates(M, _TM_PREFS, fallback=())
    tn_cands = [N] if N < 128 else _tile_candidates(N, _TN_PREFS)
    # Maximize tm FIRST (cuts weight re-streaming, feeds the MXU), then tn.
    for tm in tm_cands:
        for tn in tn_cands:
            if _fused_vmem_bytes(tm, tn, K, x_b, w_b, o_b, s_b) <= budget:
                return tm, tn
    return None


def _split_matmul_vmem_bytes(tm, tn, tk, s_b, w_b, o_b):
    return (2 * tm * tk * s_b + 2 * tk * tn * w_b + 2 * tm * tn * o_b
            + tm * tn * 4 + 2 * 2 * tn * 4)


def _select_split_tiles(M, N, K, s_b, w_b, o_b, budget):
    tm_cands = [M] if M < 128 else _tile_candidates(M, _TM_PREFS)
    tn_cands = [N] if N < 128 else _tile_candidates(N, _TN_PREFS)
    tk_cands = [K] if K < 128 else _tile_candidates(K, _TK_PREFS)
    for tm in tm_cands:
        for tn in tn_cands:
            for tk in tk_cands:
                if _split_matmul_vmem_bytes(tm, tn, tk, s_b, w_b, o_b) <= budget:
                    return tm, tn, tk
    return tm_cands[-1], tn_cands[-1], tk_cands[-1]


def _select_norm_tile(M, K, x_b, s_b, budget):
    tm_cands = [M] if M < 128 else _tile_candidates(M, (512, 256, 128))
    for tmn in tm_cands:
        if 2 * tmn * K * (x_b + s_b + 4) <= budget:
            return tmn
    return tm_cands[-1]


# --------------------------------------------------------------------------- #
# Wrapper
# --------------------------------------------------------------------------- #

def layer_norm_linear(x, weight, bias, normalization, layer_norm_weight,
                      layer_norm_bias, *, eps=1e-5, tm=None, tn=None, tk=None,
                      weight_is_transposed=False, force_split=None):
    """Fused LayerNorm/RMSNorm + Linear (forward of LayerNormLinear).

    x:                 (..., in_features)
    weight:            (out_features, in_features) PyTorch layout, or
                       (in_features, out_features) if weight_is_transposed.
    bias:              (out_features,) or None
    normalization:     'LayerNorm' or 'RMSNorm'
    layer_norm_weight: (in_features,)
    layer_norm_bias:   (in_features,) or None
    returns:           (..., out_features)
    """
    if normalization not in ("LayerNorm", "RMSNorm"):
        raise ValueError(f"Invalid normalization: {normalization}")
    rms = normalization == "RMSNorm"

    orig_shape = x.shape
    K = orig_shape[-1]
    x2 = x.reshape(-1, K)
    M = x2.shape[0]

    wt = weight if weight_is_transposed else weight.T            # (K, N)
    assert wt.shape[0] == K, "weight in_features axis mismatch"
    N = wt.shape[1]

    # MXU operand dtype: run the bf16 path whenever either operand is bf16
    # (f32 accumulation); pre-cast the weight so the dominant HBM stream is
    # half-width.  Norm math is f32 regardless.
    mxu_dtype = (jnp.bfloat16 if (x.dtype == jnp.bfloat16
                                  or wt.dtype == jnp.bfloat16)
                 else jnp.float32)
    if wt.dtype != mxu_dtype:
        wt = wt.astype(mxu_dtype)

    use_beta = (not rms) and (layer_norm_bias is not None)
    gamma = layer_norm_weight.reshape(1, K)
    beta = (layer_norm_bias if use_beta
            else jnp.zeros((K,), dtype=layer_norm_weight.dtype)).reshape(1, K)
    b2 = (bias if bias is not None
          else jnp.zeros((N,), dtype=x.dtype)).reshape(1, N)

    x_b = jnp.dtype(x.dtype).itemsize
    w_b = jnp.dtype(wt.dtype).itemsize
    o_b = jnp.dtype(x.dtype).itemsize
    s_b = jnp.dtype(mxu_dtype).itemsize

    # Generation-aware VMEM budget:  v7x (64 MiB) -> ~44 MiB budget / ~58 MiB
    # limit;  v5e/v6e (128 MiB) -> ~100 MiB budget / ~115 MiB limit.
    cap = _vmem_capacity_bytes()
    budget = min(cap - (20 << 20), int(cap * 0.78))
    limit_cap = int(cap * 0.9)

    # Path decision: fused (full-K resident) if a tile config with tm >= 128
    # (or tm == M for small M) fits the budget; otherwise split into a norm
    # pre-pass + (i, j, k)-tiled matmul.
    if force_split is True:
        use_split, fused_tiles = True, None
    else:
        if tm is not None and tn is not None and tk is None:
            fused_tiles = (tm, tn)
        else:
            fused_tiles = _select_fused_tiles(M, N, K, x_b, w_b, o_b, s_b,
                                              budget)
        if force_split is False and fused_tiles is None:
            raise ValueError("fused path requested but does not fit VMEM")
        use_split = fused_tiles is None

    flops = 2 * M * N * K
    base_bytes = M * K * x_b + K * N * w_b + M * N * o_b

    if not use_split:
        tm_, tn_ = fused_tiles
        assert M % tm_ == 0 and N % tn_ == 0, (
            "M / N must divide the chosen tiles; pad inputs or pass tm/tn")
        grid_i, grid_j = M // tm_, N // tn_
        # Cache the norm across column tiles only when there are >=2 row tiles;
        # with a single row tile, recompute the (cheap) norm per column tile so
        # both axes are 'parallel' and the v7x megacore can split the j axis.
        cache_norm = (grid_j > 1) and (grid_i >= 2)
        semantics = (("parallel", "arbitrary") if cache_norm
                     else ("parallel", "parallel"))

        usage = _fused_vmem_bytes(tm_, tn_, K, x_b, w_b, o_b, s_b)
        vmem_limit = int(min(max(usage + (8 << 20), 32 << 20), limit_cap))

        kernel = functools.partial(_fused_kernel, eps=eps, rms=rms,
                                   use_beta=use_beta, cache_norm=cache_norm)
        scratch = ((pltpu.VMEM((tm_, K), mxu_dtype),) if cache_norm else ())

        out = pl.pallas_call(
            kernel,
            out_shape=jax.ShapeDtypeStruct((M, N), x.dtype),
            grid_spec=pltpu.PrefetchScalarGridSpec(
                num_scalar_prefetch=0,
                grid=(grid_i, grid_j),
                in_specs=[
                    pl.BlockSpec((tm_, K), lambda i, j: (i, 0)),   # x rows
                    pl.BlockSpec((1, K), lambda i, j: (0, 0)),     # gamma
                    pl.BlockSpec((1, K), lambda i, j: (0, 0)),     # beta
                    pl.BlockSpec((K, tn_), lambda i, j: (0, j)),   # W^T slice
                    pl.BlockSpec((1, tn_), lambda i, j: (0, j)),   # bias slice
                ],
                out_specs=pl.BlockSpec((tm_, tn_), lambda i, j: (i, j)),
                scratch_shapes=scratch,
            ),
            compiler_params=pltpu.CompilerParams(
                dimension_semantics=semantics,
                vmem_limit_bytes=vmem_limit),
            cost_estimate=pl.CostEstimate(
                flops=flops, transcendentals=M,
                bytes_accessed=base_bytes + (grid_i - 1) * K * N * w_b),
        )(x2, gamma, beta, wt, b2)
        return out.reshape(*orig_shape[:-1], N)

    # ---------------- split path: norm pre-pass + K-blocked matmul ----------
    tmn = _select_norm_tile(M, K, x_b, s_b, budget)
    assert M % tmn == 0
    norm_usage = 2 * tmn * K * (x_b + s_b + 4) + 4 * 2 * K * 4
    norm_limit = int(min(max(norm_usage + (8 << 20), 32 << 20), limit_cap))
    norm_kernel = functools.partial(_norm_kernel, eps=eps, rms=rms,
                                    use_beta=use_beta)
    xn = pl.pallas_call(
        norm_kernel,
        out_shape=jax.ShapeDtypeStruct((M, K), mxu_dtype),
        grid_spec=pltpu.PrefetchScalarGridSpec(
            num_scalar_prefetch=0,
            grid=(M // tmn,),
            in_specs=[
                pl.BlockSpec((tmn, K), lambda i: (i, 0)),
                pl.BlockSpec((1, K), lambda i: (0, 0)),
                pl.BlockSpec((1, K), lambda i: (0, 0)),
            ],
            out_specs=pl.BlockSpec((tmn, K), lambda i: (i, 0)),
        ),
        compiler_params=pltpu.CompilerParams(
            dimension_semantics=("parallel",),
            vmem_limit_bytes=norm_limit),
        cost_estimate=pl.CostEstimate(
            flops=5 * M * K, transcendentals=M,
            bytes_accessed=M * K * (x_b + s_b)),
    )(x2, gamma, beta)

    if tm is not None and tn is not None and tk is not None:
        tm_, tn_, tk_ = tm, tn, tk
    else:
        tm_, tn_, tk_ = _select_split_tiles(M, N, K, s_b, w_b, o_b, budget)
        tm_ = tm if tm is not None else tm_
        tn_ = tn if tn is not None else tn_
        tk_ = tk if tk is not None else tk_
    assert M % tm_ == 0 and N % tn_ == 0 and K % tk_ == 0, (
        "M / N / K must divide the chosen tiles; pad or pass tm/tn/tk")

    mm_usage = _split_matmul_vmem_bytes(tm_, tn_, tk_, s_b, w_b, o_b)
    mm_limit = int(min(max(mm_usage + (8 << 20), 32 << 20), limit_cap))

    out = pl.pallas_call(
        _matmul_bias_kernel,
        out_shape=jax.ShapeDtypeStruct((M, N), x.dtype),
        grid_spec=pltpu.PrefetchScalarGridSpec(
            num_scalar_prefetch=0,
            grid=(M // tm_, N // tn_, K // tk_),
            in_specs=[
                pl.BlockSpec((tm_, tk_), lambda i, j, k: (i, k)),  # xn
                pl.BlockSpec((tk_, tn_), lambda i, j, k: (k, j)),  # W^T
                pl.BlockSpec((1, tn_), lambda i, j, k: (0, j)),    # bias
            ],
            out_specs=pl.BlockSpec((tm_, tn_), lambda i, j, k: (i, j)),
            scratch_shapes=[pltpu.VMEM((tm_, tn_), jnp.float32)],
        ),
        compiler_params=pltpu.CompilerParams(
            dimension_semantics=("parallel", "parallel", "arbitrary"),
            vmem_limit_bytes=mm_limit),
        cost_estimate=pl.CostEstimate(
            flops=flops, transcendentals=0,
            bytes_accessed=M * K * s_b + K * N * w_b + M * N * o_b),
    )(xn, wt, b2)
    return out.reshape(*orig_shape[:-1], N)


# --------------------------------------------------------------------------- #
# Reference & tests
# --------------------------------------------------------------------------- #

def _reference(x, weight, bias, normalization, gamma, beta, eps):
    xf = x.astype(jnp.float32)
    g = gamma.astype(jnp.float32)
    if normalization == "LayerNorm":
        mean = jnp.mean(xf, axis=-1, keepdims=True)
        var = jnp.mean((xf - mean) ** 2, axis=-1, keepdims=True)
        xn = (xf - mean) / jnp.sqrt(var + eps) * g
        if beta is not None:
            xn = xn + beta.astype(jnp.float32)
    else:  # RMSNorm
        ms = jnp.mean(xf * xf, axis=-1, keepdims=True)
        xn = xf / jnp.sqrt(ms + eps) * g
    out = xn @ weight.T.astype(jnp.float32)
    if bias is not None:
        out = out + bias.astype(jnp.float32)
    return out


if __name__ == "__main__":
    eps = 1e-5
    key = jax.random.PRNGKey(0)
    kx, kw, kg, kb, kbias, kx3, kw3, kb3, kx4, kw4, kg4, kbb4 = \
        jax.random.split(key, 12)

    # ---- Case 1: small shapes, fused single-tile path (LayerNorm + RMSNorm)
    batch, seq, in_features, out_features = 2, 8, 128, 256
    x = jax.random.normal(kx, (batch, seq, in_features), dtype=jnp.float32)
    weight = 0.02 * jax.random.truncated_normal(
        kw, -2.0, 2.0, (out_features, in_features), dtype=jnp.float32)
    ln_w = 1.0 + 0.1 * jax.random.normal(kg, (in_features,), dtype=jnp.float32)
    ln_b = 0.1 * jax.random.normal(kb, (in_features,), dtype=jnp.float32)
    bias = 0.1 * jax.random.normal(kbias, (out_features,), dtype=jnp.float32)
    weight_t = jnp.asarray(weight.T)   # hoist transpose (parameter prep)

    out = layer_norm_linear(x, weight_t, bias, "LayerNorm", ln_w, ln_b,
                            eps=eps, weight_is_transposed=True)
    out = jax.block_until_ready(out)
    ref = _reference(x, weight, bias, "LayerNorm", ln_w, ln_b, eps)
    assert out.shape == (batch, seq, out_features)
    assert jnp.allclose(out, ref.astype(out.dtype), atol=1e-4, rtol=1e-4), \
        "LayerNorm mismatch vs reference"

    out_rms = layer_norm_linear(x, weight_t, bias, "RMSNorm", ln_w, None,
                                eps=eps, weight_is_transposed=True)
    out_rms = jax.block_until_ready(out_rms)
    ref_rms = _reference(x, weight, bias, "RMSNorm", ln_w, None, eps)
    assert jnp.allclose(out_rms, ref_rms.astype(out_rms.dtype),
                        atol=1e-4, rtol=1e-4), "RMSNorm mismatch vs reference"

    # ---- Case 2: bf16 operands on the MXU (looser tolerance vs f32 ref)
    out_bf16 = layer_norm_linear(
        x.astype(jnp.bfloat16), weight_t.astype(jnp.bfloat16),
        bias.astype(jnp.bfloat16), "LayerNorm",
        ln_w.astype(jnp.bfloat16), ln_b.astype(jnp.bfloat16),
        eps=eps, weight_is_transposed=True)
    out_bf16 = jax.block_until_ready(out_bf16)
    assert jnp.allclose(out_bf16.astype(jnp.float32), ref,
                        atol=6e-2, rtol=6e-2), "bf16 path mismatch vs reference"

    # ---- Case 3: multi-tile fused path with cached norm (grid 2x2)
    M3, K3, N3 = 256, 128, 512
    x3 = jax.random.normal(kx3, (2, M3 // 2, K3), dtype=jnp.float32)
    w3 = 0.02 * jax.random.normal(kw3, (N3, K3), dtype=jnp.float32)
    b3 = 0.1 * jax.random.normal(kb3, (N3,), dtype=jnp.float32)
    out3 = layer_norm_linear(x3, jnp.asarray(w3.T), b3, "LayerNorm", ln_w, ln_b,
                             eps=eps, weight_is_transposed=True,
                             tm=128, tn=256)
    out3 = jax.block_until_ready(out3)
    ref3 = _reference(x3, w3, b3, "LayerNorm", ln_w, ln_b, eps)
    assert jnp.allclose(out3, ref3.astype(out3.dtype), atol=1e-4, rtol=1e-4), \
        "cached-norm fused path mismatch vs reference"

    # ---- Case 4: split path (norm pre-pass + K-blocked matmul, 2 k-steps)
    M4, K4, N4 = 128, 256, 256
    x4 = jax.random.normal(kx4, (2, M4 // 2, K4), dtype=jnp.float32)
    w4 = 0.02 * jax.random.normal(kw4, (N4, K4), dtype=jnp.float32)
    ln_w4 = 1.0 + 0.1 * jax.random.normal(kg4, (K4,), dtype=jnp.float32)
    ln_b4 = 0.1 * jax.random.normal(kbb4, (K4,), dtype=jnp.float32)
    out4 = layer_norm_linear(x4, jnp.asarray(w4.T), None, "LayerNorm",
                             ln_w4, ln_b4, eps=eps, weight_is_transposed=True,
                             force_split=True, tm=128, tn=256, tk=128)
    out4 = jax.block_until_ready(out4)
    ref4 = _reference(x4, w4, None, "LayerNorm", ln_w4, ln_b4, eps)
    assert jnp.allclose(out4, ref4.astype(out4.dtype), atol=1e-4, rtol=1e-4), \
        "split (norm pre-pass + matmul) path mismatch vs reference"

    print("KERNEL_OK")
</pallas_src>

<mosaic_0001>
module attributes {stable_mosaic.version = 11 : i64} {
  func.func @_fused_kernel(%arg0: i32, %arg1: i32, %arg2: memref<16x128xf32, #tpu.memory_space<vmem>>, %arg3: memref<1x128xf32, #tpu.memory_space<vmem>>, %arg4: memref<1x128xf32, #tpu.memory_space<vmem>>, %arg5: memref<128x256xf32, #tpu.memory_space<vmem>>, %arg6: memref<1x256xf32, #tpu.memory_space<vmem>>, %arg7: memref<16x256xf32, #tpu.memory_space<vmem>>) attributes {dimension_semantics = [#tpu.dimension_semantics<parallel>, #tpu.dimension_semantics<parallel>], iteration_bounds = array<i64: 1, 1>, scalar_prefetch = 0 : i64, scratch_operands = 0 : i64, tpu.core_type = #tpu.core_type<tc>, window_params = [{transform_indices = @transform_0, window_bounds = array<i64: 16, 128>}, {pipeline_mode = #tpu.pipeline_mode<synchronous>, transform_indices = @transform_1, window_bounds = array<i64: 1, 128>}, {pipeline_mode = #tpu.pipeline_mode<synchronous>, transform_indices = @transform_2, window_bounds = array<i64: 1, 128>}, {transform_indices = @transform_3, window_bounds = array<i64: 128, 256>}, {transform_indices = @transform_4, window_bounds = array<i64: 1, 256>}, {transform_indices = @transform_5, window_bounds = array<i64: 16, 256>}]} {
    %c0 = arith.constant 0 : index
    %c0_0 = arith.constant 0 : index
    %0 = vector.load %arg2[%c0, %c0_0] : memref<16x128xf32, #tpu.memory_space<vmem>>, vector<16x128xf32>
    %c0_1 = arith.constant 0 : index
    %c0_2 = arith.constant 0 : index
    %1 = vector.load %arg3[%c0_1, %c0_2] : memref<1x128xf32, #tpu.memory_space<vmem>>, vector<1x128xf32>
    %cst = arith.constant dense<0.000000e+00> : vector<16xf32>
    %2 = vector.multi_reduction <add>, %0, %cst [1] : vector<16x128xf32> to vector<16xf32>
    %3 = vector.shape_cast %2 : vector<16xf32> to vector<16x1xf32>
    %cst_3 = arith.constant 1.280000e+02 : f32
    %4 = vector.broadcast %cst_3 : f32 to vector<16x1xf32>
    %5 = arith.divf %3, %4 : vector<16x1xf32>
    %6 = vector.broadcast %5 : vector<16x1xf32> to vector<16x128xf32>
    %7 = arith.subf %0, %6 : vector<16x128xf32>
    %8 = arith.mulf %7, %7 : vector<16x128xf32>
    %cst_4 = arith.constant dense<0.000000e+00> : vector<16xf32>
    %9 = vector.multi_reduction <add>, %8, %cst_4 [1] : vector<16x128xf32> to vector<16xf32>
    %10 = vector.shape_cast %9 : vector<16xf32> to vector<16x1xf32>
    %cst_5 = arith.constant 1.280000e+02 : f32
    %11 = vector.broadcast %cst_5 : f32 to vector<16x1xf32>
    %12 = arith.divf %10, %11 : vector<16x1xf32>
    %cst_6 = arith.constant 9.99999974E-6 : f32
    %13 = vector.broadcast %cst_6 : f32 to vector<16x1xf32>
    %14 = arith.addf %12, %13 : vector<16x1xf32>
    %15 = math.rsqrt %14 : vector<16x1xf32>
    %16 = vector.broadcast %15 : vector<16x1xf32> to vector<16x128xf32>
    %17 = vector.broadcast %1 : vector<1x128xf32> to vector<16x128xf32>
    %18 = arith.mulf %16, %17 : vector<16x128xf32>
    %19 = arith.mulf %7, %18 : vector<16x128xf32>
    %c0_7 = arith.constant 0 : index
    %c0_8 = arith.constant 0 : index
    %20 = vector.load %arg4[%c0_7, %c0_8] : memref<1x128xf32, #tpu.memory_space<vmem>>, vector<1x128xf32>
    %21 = vector.broadcast %20 : vector<1x128xf32> to vector<16x128xf32>
    %22 = arith.addf %19, %21 : vector<16x128xf32>
    %c0_9 = arith.constant 0 : index
    %c0_10 = arith.constant 0 : index
    %23 = vector.load %arg5[%c0_9, %c0_10] : memref<128x256xf32, #tpu.memory_space<vmem>>, vector<128x256xf32>
    %cst_11 = arith.constant dense<0.000000e+00> : vector<16x256xf32>
    %24 = tpu.matmul %22, %23, %cst_11 {dimension_numbers = #tpu.dot_dimension_numbers<[1], [0], [0], [1], [0, 0, 1, 1], [], []>} : vector<16x128xf32>, vector<128x256xf32>, vector<16x256xf32> -> vector<16x256xf32>
    %c0_12 = arith.constant 0 : index
    %c0_13 = arith.constant 0 : index
    %25 = vector.load %arg6[%c0_12, %c0_13] : memref<1x256xf32, #tpu.memory_space<vmem>>, vector<1x256xf32>
    %26 = vector.broadcast %25 : vector<1x256xf32> to vector<16x256xf32>
    %27 = arith.addf %24, %26 : vector<16x256xf32>
    %c0_14 = arith.constant 0 : index
    %c0_15 = arith.constant 0 : index
    %28 = vector.load %arg7[%c0_14, %c0_15] : memref<16x256xf32, #tpu.memory_space<vmem>>, vector<16x256xf32>
    tpu.vector_store %arg7[%c0_14, %c0_15], %27 {strides = array<i32>} : memref<16x256xf32, #tpu.memory_space<vmem>>, vector<16x256xf32>,
    return
  }
  func.func @transform_0(%arg0: i32, %arg1: i32) -> (i32, i32) {
    %c0_i32 = arith.constant 0 : i32
    %c0_i32_0 = arith.constant 0 : i32
    return %arg0, %c0_i32 : i32, i32
  }
  func.func @transform_1(%arg0: i32, %arg1: i32) -> (i32, i32) {
    %c0_i32 = arith.constant 0 : i32
    %c0_i32_0 = arith.constant 0 : i32
    %c0_i32_1 = arith.constant 0 : i32
    return %c0_i32, %c0_i32_0 : i32, i32
  }
  func.func @transform_2(%arg0: i32, %arg1: i32) -> (i32, i32) {
    %c0_i32 = arith.constant 0 : i32
    %c0_i32_0 = arith.constant 0 : i32
    %c0_i32_1 = arith.constant 0 : i32
    return %c0_i32, %c0_i32_0 : i32, i32
  }
  func.func @transform_3(%arg0: i32, %arg1: i32) -> (i32, i32) {
    %c0_i32 = arith.constant 0 : i32
    %c0_i32_0 = arith.constant 0 : i32
    return %c0_i32, %arg1 : i32, i32
  }
  func.func @transform_4(%arg0: i32, %arg1: i32) -> (i32, i32) {
    %c0_i32 = arith.constant 0 : i32
    %c0_i32_0 = arith.constant 0 : i32
    return %c0_i32, %arg1 : i32, i32
  }
  func.func @transform_5(%arg0: i32, %arg1: i32) -> (i32, i32) {
    %c0_i32 = arith.constant 0 : i32
    return %arg0, %arg1 : i32, i32
  }
}

</mosaic_0001>

<llo_original>
// kernel: tpu_custom_call.1
$region0: #{tpu_custom_call.1}
  #allocation0 [shape = 'u32[]', space=smem, size = 0x4, offset = 0x4, fixed_abs, tag = 'smem constant byte address 0x4 - core index']
  #allocation1 [shape = 'u32[72,128]{1,0:T(1,128)}', space=vmem, size = 0x9000, scoped, tag = 'internal scratch']
  %s0 = inlined_call_operand.hbm [shape: f32[16,128], index: 0, kind: input, shape index: {}]
  %s1 = inlined_call_operand.hbm [shape: f32[1,128], index: 1, kind: input, shape index: {}]
  %s2 = inlined_call_operand.vmem [shape: f32[1,128], index: 2, kind: input, shape index: {}]
  %s3 = inlined_call_operand.hbm [shape: f32[128,256], index: 3, kind: input, shape index: {}]
  %s4 = inlined_call_operand.vmem [shape: f32[1,256], index: 4, kind: input, shape index: {}]
  %s5 = inlined_call_operand.hbm [shape: f32[16,256], index: 5, kind: output, shape index: {}]
  %s6 = sld [smem:[#allocation0]]
  $region42: #{tpu_custom_call.1} parent=0
    _
  %s8 = ssub.s32 1, %s6
  %s9 = scalar_select 0, %s8, %s6
  $region1: #{tpu_custom_call.1} parent=0
    #allocation2 [shape = 'u8[8192]{0}', space=vmem, size = 0x2000, scoped, tag = 'input window, operand 0, single buffered']
    #allocation3 [shape = 's32[1]{0}', space=sflag, size = 0x4, scoped, tag = 'scoped memory for tpu_custom_call.1']
    #allocation4 [shape = 's32[1]{0}', space=sflag, size = 0x4, scoped, tag = 'scoped memory for tpu_custom_call.1']
    #allocation5 [shape = 'u8[512]{0}', space=vmem, size = 0x400, scoped, tag = 'input window, operand 1, single buffered']
    #allocation6 [shape = 's32[1]{0}', space=sflag, size = 0x4, scoped, tag = 'scoped memory for tpu_custom_call.1']
    #allocation7 [shape = 'u8[131072]{0}', space=vmem, size = 0x20000, scoped, tag = 'input window, operand 3, single buffered']
    #allocation8 [shape = 'u8[16384]{0}', space=vmem, size = 0x4000, scoped, tag = 'output window, operand 0, single buffered']
    %10 = vsyncpa [#allocation3], 0
    %11 = vsyncpa [#allocation6], 0
    %12 = vsyncpa [#allocation4], 0
    // Predicated region
    $region2: #{tpu_custom_call.1} parent=1 // pred_check
      _
    $region3: #{tpu_custom_call.1} parent=1 // pred_check_branch
      %14 = sbr.rel (0) target = $region5
    $region4: #{tpu_custom_call.1} parent=1 // pred_region
      %16 = vsyncadd [#allocation3], 0
      %s17 = sshll.u32 %s0, 4
      %s18 = int_to_ptr.hbm [resolvable:$true] %s17
      %s19 = sshll.u32 [#allocation2], 4
      %s20 = int_to_ptr.vmem [resolvable:$true] %s19
      %25 = dma.hbm_to_vmem [thread:$0]  %s18, 256, %s20, [#allocation3], 128, 128, 8
    $region5: #{tpu_custom_call.1} parent=1 // pred_fallthru
      _
    // Predicated region
    $region6: #{tpu_custom_call.1} parent=1 // pred_check
      _
    $region7: #{tpu_custom_call.1} parent=1 // pred_check_branch
      %27 = sbr.rel (0) target = $region9
    $region8: #{tpu_custom_call.1} parent=1 // pred_region
      %29 = vsyncadd [#allocation6], 0
      %s31 = sshll.u32 %s1, 4
      %s32 = int_to_ptr.hbm [resolvable:$true] %s31
      %s33 = sshll.u32 [#allocation5], 4
      %s34 = int_to_ptr.vmem [resolvable:$true] %s33
      %36 = dma.hbm_to_vmem [thread:$0]  %s32, 16, %s34, [#allocation6]
    $region9: #{tpu_custom_call.1} parent=1 // pred_fallthru
      _
    // Predicated region
    $region10: #{tpu_custom_call.1} parent=1 // pred_check
      _
    $region11: #{tpu_custom_call.1} parent=1 // pred_check_branch
      %38 = sbr.rel (0) target = $region13
    $region12: #{tpu_custom_call.1} parent=1 // pred_region
      _
    $region13: #{tpu_custom_call.1} parent=1 // pred_fallthru
      _
    // Predicated region
    $region14: #{tpu_custom_call.1} parent=1 // pred_check
      _
    $region15: #{tpu_custom_call.1} parent=1 // pred_check_branch
      %40 = sbr.rel (0) target = $region17
    $region16: #{tpu_custom_call.1} parent=1 // pred_region
      %42 = vsyncadd [#allocation6], 0
      %s43 = sshll.u32 %s3, 4
      %s44 = int_to_ptr.hbm [resolvable:$true] %s43
      %s45 = sshll.u32 [#allocation7], 4
      %s46 = int_to_ptr.vmem [resolvable:$true] %s45
      %51 = dma.hbm_to_vmem [thread:$0]  %s44, 4096, %s46, [#allocation6], 256, 256, 16
    $region17: #{tpu_custom_call.1} parent=1 // pred_fallthru
      _
    // Predicated region
    $region18: #{tpu_custom_call.1} parent=1 // pred_check
      _
    $region19: #{tpu_custom_call.1} parent=1 // pred_check_branch
      %53 = sbr.rel (0) target = $region21
    $region20: #{tpu_custom_call.1} parent=1 // pred_region
      _
    $region21: #{tpu_custom_call.1} parent=1 // pred_fallthru
      _
    // Predicated region
    $region22: #{tpu_custom_call.1} parent=1 // pred_check
      _
    $region23: #{tpu_custom_call.1} parent=1 // pred_check_branch
      %55 = sbr.rel (0) target = $region25
    $region24: #{tpu_custom_call.1} parent=1 // pred_region
      %57 = dma.done [#allocation3], 256
    $region25: #{tpu_custom_call.1} parent=1 // pred_fallthru
      _
    // Predicated region
    $region26: #{tpu_custom_call.1} parent=1 // pred_check
      _
    $region27: #{tpu_custom_call.1} parent=1 // pred_check_branch
      %59 = sbr.rel (0) target = $region29
    $region28: #{tpu_custom_call.1} parent=1 // pred_region
      %61 = dma.done [#allocation6], 16
    $region29: #{tpu_custom_call.1} parent=1 // pred_fallthru
      _
    // Predicated region
    $region30: #{tpu_custom_call.1} parent=1 // pred_check
      _
    $region31: #{tpu_custom_call.1} parent=1 // pred_check_branch
      %63 = sbr.rel (0) target = $region33
    $region32: #{tpu_custom_call.1} parent=1 // pred_region
      %65 = dma.done [#allocation6], 4096
    $region33: #{tpu_custom_call.1} parent=1 // pred_fallthru
      _
    %v66 = vld [vmem:[#allocation2] sm:$0xff]
    %v67 = vld [vmem:[#allocation2 + $0x8] sm:$0xff]
    %v68 = vld [vmem:[#allocation5] sm:$0x1]
    %69 = vadd.xlane.f32.xlu0 %v66
    %v70 = vpop.xlane.xlu0 %69
    %71 = vadd.xlane.f32.xlu0 %v67
    %v72 = vpop.xlane.xlu0 %71
    %v73 = vrcp.pop 128.0
    %v74 = vmul.f32 128.0, %v73
    %v75 = vsub.f32 1.0, %v74
    %v76 = vmul.f32 %v73, %v75
    %v77 = vadd.f32 %v73, %v76
    %vm78 = vweird.f32 %v73
    %v79 = vsel %vm78, %v73, %v77
    %v80 = vmul.f32 %v70, %v79
    %v81 = vmul.f32 %v72, %v79
    %v82 = vsub.f32 %v66, %v80
    %v83 = vsub.f32 %v67, %v81
    %v84 = vmul.f32 %v82, %v82
    %v85 = vmul.f32 %v83, %v83
    %86 = vadd.xlane.f32.xlu0 %v84
    %v87 = vpop.xlane.xlu0 %86
    %88 = vadd.xlane.f32.xlu0 %v85
    %v89 = vpop.xlane.xlu0 %88
    %v90 = vmul.f32 %v87, %v79
    %v91 = vmul.f32 %v89, %v79
    %v92 = vadd.f32 %v90, 1e-05
    %v93 = vadd.f32 %v91, 1e-05
    %v94 = vrsqrt.pop %v92
    %v95 = vmul.f32 %v94, %v92
    %v96 = vmul.f32 %v95, %v94
    %v97 = vmul.f32 0.5, %v96
    %v98 = vsub.f32 1.5, %v97
    %v99 = vmul.f32 %v94, %v98
    %vm100 = vweird.f32 %v92
    %vm101 = vweird.f32 %v94
    %vm102 = vmor %vm100, %vm101
    %v103 = vsel %vm102, %v94, %v99
    %v104 = vrsqrt.pop %v93
    %v105 = vmul.f32 %v104, %v93
    %v106 = vmul.f32 %v105, %v104
    %v107 = vmul.f32 0.5, %v106
    %v108 = vsub.f32 1.5, %v107
    %v109 = vmul.f32 %v104, %v108
    %vm110 = vweird.f32 %v93
    %vm111 = vweird.f32 %v104
    %vm112 = vmor %vm110, %vm111
    %v113 = vsel %vm112, %v104, %v109
    %v115 = vperm.slane %v68, 0
    %v117 = vmul.f32 %v103, %v115
    %v118 = vmul.f32 %v113, %v115
    %v119 = vmul.f32 %v82, %v117
    %v120 = vmul.f32 %v83, %v118
    %v121 = vld [vmem:[%s2] sm:$0x1]
    %v123 = vperm.slane %v121, 0
    %v125 = vadd.f32 %v119, %v123
    %v126 = vadd.f32 %v120, %v123
    %v127 = vld [vmem:[#allocation7] sm:$0xff]
    %v128 = vld [vmem:[#allocation7 + $0x8] sm:$0xff]
    %v129 = vld [vmem:[#allocation7 + $0x10] sm:$0xff]
    %v130 = vld [vmem:[#allocation7 + $0x18] sm:$0xff]
    %v131 = vld [vmem:[#allocation7 + $0x20] sm:$0xff]
    %v132 = vld [vmem:[#allocation7 + $0x28] sm:$0xff]
    %v133 = vld [vmem:[#allocation7 + $0x30] sm:$0xff]
    %v134 = vld [vmem:[#allocation7 + $0x38] sm:$0xff]
    %v135 = vld [vmem:[#allocation7 + $0x40] sm:$0xff]
    %v136 = vld [vmem:[#allocation7 + $0x48] sm:$0xff]
    %v137 = vld [vmem:[#allocation7 + $0x50] sm:$0xff]
    %v138 = vld [vmem:[#allocation7 + $0x58] sm:$0xff]
    %v139 = vld [vmem:[#allocation7 + $0x60] sm:$0xff]
    %v140 = vld [vmem:[#allocation7 + $0x68] sm:$0xff]
    %v141 = vld [vmem:[#allocation7 + $0x70] sm:$0xff]
    %v142 = vld [vmem:[#allocation7 + $0x78] sm:$0xff]
    %v143 = vld [vmem:[#allocation7 + $0x80] sm:$0xff]
    %v144 = vld [vmem:[#allocation7 + $0x88] sm:$0xff]
    %v145 = vld [vmem:[#allocation7 + $0x90] sm:$0xff]
    %v146 = vld [vmem:[#allocation7 + $0x98] sm:$0xff]
    %v147 = vld [vmem:[#allocation7 + $0xa0] sm:$0xff]
    %v148 = vld [vmem:[#allocation7 + $0xa8] sm:$0xff]
    %v149 = vld [vmem:[#allocation7 + $0xb0] sm:$0xff]
    %v150 = vld [vmem:[#allocation7 + $0xb8] sm:$0xff]
    %v151 = vld [vmem:[#allocation7 + $0xc0] sm:$0xff]
    %v152 = vld [vmem:[#allocation7 + $0xc8] sm:$0xff]
    %v153 = vld [vmem:[#allocation7 + $0xd0] sm:$0xff]
    %v154 = vld [vmem:[#allocation7 + $0xd8] sm:$0xff]
    %v155 = vld [vmem:[#allocation7 + $0xe0] sm:$0xff]
    %v156 = vld [vmem:[#allocation7 + $0xe8] sm:$0xff]
    %v157 = vld [vmem:[#allocation7 + $0xf0] sm:$0xff]
    %v158 = vld [vmem:[#allocation7 + $0xf8] sm:$0xff]
    %v159 = vld [vmem:[%s4] sm:$0x3]
    %v161 = vperm.slane %v159, 0
    %v162 = vperm.slane %v159, 1
    %165 = vmatpush.msra.mxu0 %v157
    %166 = vmatpush.msra.mxu0 %v155
    %167 = vmatpush.msra.mxu0 %v153
    %168 = vmatpush.msra.mxu0 %v151
    %169 = vmatpush.msra.mxu0 %v149
    %170 = vmatpush.msra.mxu0 %v147
    %171 = vmatpush.msra.mxu0 %v145
    %172 = vmatpush.msra.mxu0 %v143
    %173 = vmatpush.msra.mxu0 %v141
    %174 = vmatpush.msra.mxu0 %v139
    %175 = vmatpush.msra.mxu0 %v137
    %176 = vmatpush.msra.mxu0 %v135
    %177 = vmatpush.msra.mxu0 %v133
    %178 = vmatpush.msra.mxu0 %v131
    %179 = vmatpush.msra.mxu0 %v129
    %180 = vmatpush.msra.mxu0 %v127
    %181 = vmatmul.f32.gmra.mxu0 %v125
    %v182 = vpop.f32.mrf.mxu0
    %v183 = vadd.f32 %v161, %v182
    %184 = vmatmul.f32.gmra.mxu0 %v126
    %v185 = vpop.f32.mrf.mxu0
    %v186 = vadd.f32 %v161, %v185
    %187 = vdwg.mxu0
    %188 = vmatpush.msra.mxu0 %v158
    %189 = vmatpush.msra.mxu0 %v156
    %190 = vmatpush.msra.mxu0 %v154
    %191 = vmatpush.msra.mxu0 %v152
    %192 = vmatpush.msra.mxu0 %v150
    %193 = vmatpush.msra.mxu0 %v148
    %194 = vmatpush.msra.mxu0 %v146
    %195 = vmatpush.msra.mxu0 %v144
    %196 = vmatpush.msra.mxu0 %v142
    %197 = vmatpush.msra.mxu0 %v140
    %198 = vmatpush.msra.mxu0 %v138
    %199 = vmatpush.msra.mxu0 %v136
    %200 = vmatpush.msra.mxu0 %v134
    %201 = vmatpush.msra.mxu0 %v132
    %202 = vmatpush.msra.mxu0 %v130
    %203 = vmatpush.msra.mxu0 %v128
    %204 = vmatmul.f32.gmra.mxu0 %v125
    %v205 = vpop.f32.mrf.mxu0
    %v206 = vadd.f32 %v162, %v205
    %207 = vmatmul.f32.gmra.mxu0 %v126
    %v208 = vpop.f32.mrf.mxu0
    %v209 = vadd.f32 %v162, %v208
    %210 = vdwg.mxu0
    %211 = vst [vmem:[#allocation8] sm:$0xff] %v183
    %212 = vst [vmem:[#allocation8 + $0x8] sm:$0xff] %v206
    %213 = vst [vmem:[#allocation8 + $0x10] sm:$0xff] %v186
    %214 = vst [vmem:[#allocation8 + $0x18] sm:$0xff] %v209
    // Predicated region
    $region34: #{tpu_custom_call.1} parent=1 // pred_check
      _
    $region35: #{tpu_custom_call.1} parent=1 // pred_check_branch
      %216 = sbr.rel (0) target = $region37
    $region36: #{tpu_custom_call.1} parent=1 // pred_region
      %218 = vsyncadd [#allocation4], 0
      %s219 = sshll.u32 [#allocation8], 4
      %s220 = int_to_ptr.vmem [resolvable:$true] %s219
      %s221 = sshll.u32 %s5, 4
      %s222 = int_to_ptr.hbm [resolvable:$true] %s221
      %227 = dma.vmem_to_hbm [thread:$0]  %s220, 512, %s222, [#allocation4], 256, 256, 16
    $region37: #{tpu_custom_call.1} parent=1 // pred_fallthru
      _
    // Predicated region
    $region38: #{tpu_custom_call.1} parent=1 // pred_check
      _
    $region39: #{tpu_custom_call.1} parent=1 // pred_check_branch
      %229 = sbr.rel (0) target = $region41
    $region40: #{tpu_custom_call.1} parent=1 // pred_region
      %231 = dma.done [#allocation4], 512
    $region41: #{tpu_custom_call.1} parent=1 // pred_fallthru
      _
    %232 = vsyncpa [#allocation3], 1
    %233 = vsyncpa [#allocation6], 1
    %234 = vsyncpa [#allocation4], 1

</llo_original>
